<compile_context>
chip_gen: v6e
topology: v6e:2x2x1
jax: 0.10.0
libtpu: 0.0.40
codegen_flags: <defaults>
</compile_context>

<pallas_src>
import math
from functools import partial

import jax
import jax.numpy as jnp
from jax.experimental import pallas as pl
from jax.experimental.pallas import tpu as pltpu

_LANE = 128


def _round_up(x: int, m: int) -> int:
    return ((x + m - 1) // m) * m


def _cdiv(a: int, b: int) -> int:
    return (a + b - 1) // b


def _derive_tile(rows: int, d: int, h: int, vmem_budget_bytes: int = 16 * 1024 * 1024):
    """Pick a lane-aligned row-tile TM (rows on the lane axis) from a VMEM budget."""
    rows_p = _round_up(max(rows, _LANE), _LANE)
    # per-row VMEM bytes: double-buffered x/mask/out blocks + (H,TM)+(D,TM) intermediates
    per_row = 2 * 2 * (d * 4 + 4 + d * 4) + (h + d) * 4
    tm_budget = max(_LANE, (vmem_budget_bytes // per_row) // _LANE * _LANE)
    n_steps = _cdiv(rows_p, tm_budget)
    if rows_p >= 2 * _LANE:
        n_steps = max(n_steps, 2)          # keep both v7x TensorCores busy
    tm = _round_up(_cdiv(rows_p, n_steps), _LANE)
    rows_p = tm * n_steps                   # tiny tail pad (< TM rows), no full copy pass
    return tm, rows_p, n_steps


# ---------------------------------------------------------------------------
# Pallas kernel: vector-field MLP + (optional) folded diffusion epilogue
# Feature-major layout: rows live on the lane axis.
# ---------------------------------------------------------------------------
def _vf_kernel(scal_ref,                 # SMEM scalars: [c0, c1] (diffusion only)
               x_ref, m_ref,             # (D, TM), (1, TM)
               p1_ref,                   # (H, D+1) = [W1^T | t*wt+b1]
               p2_ref,                   # (D, H+1) = [W2^T | b2]
               o_ref,                    # (D, TM)
               *, diffusion: bool, d_in: int, hidden: int):
    x = x_ref[...]                       # (D, TM) f32, lane-dense
    w1t = p1_ref[:, :d_in]               # (H, D)
    bias = p1_ref[:, d_in:d_in + 1]      # (H, 1)   time conditioning already fused
    w2t = p2_ref[:, :hidden]             # (D, H)
    b2t = p2_ref[:, hidden:hidden + 1]   # (D, 1)

    # Layer 1: K = D is tiny (e.g. 4) -> D broadcast-FMAs on the VPU, (H,1)*(1,TM).
    h = bias + w1t[:, 0:1] * x[0:1, :]   # (H, TM)
    for d in range(1, d_in):             # static unroll
        h = h + w1t[:, d:d + 1] * x[d:d + 1, :]
    h = jnp.where(h > 0, h, 0.01 * h)    # leaky_relu(0.01)

    # Layer 2: MXU with N = TM (lane-dense result), f32 accumulation.
    v = jnp.dot(w2t, h, preferred_element_type=jnp.float32) + b2t   # (D, TM)
    v = v * m_ref[...]                   # (1, TM) broadcast mask

    if diffusion:
        c0 = scal_ref[0]                 # -0.5 * betas
        c1 = scal_ref[1]                 #  0.5 * betas / noise_rates
        o_ref[...] = c0 * x + c1 * v
    else:
        o_ref[...] = v


# ---------------------------------------------------------------------------
# Wrapper (glue): schedule scalars, fused bias, packed params, lane-major tiles
# ---------------------------------------------------------------------------
def ode_wrapper_forward(t, x, mask, params, *, loss_type="FM-OT",
                        diff_config={"max_sr": 0.999, "min_sr": 0.02},
                        vmem_budget_bytes=16 * 1024 * 1024):
    B, N, D = x.shape
    H = params["w1"].shape[1]
    diffusion = (loss_type == "diffusion")

    t = jnp.asarray(t, jnp.float32)

    # --- glue: VP cosine diffusion schedule scalars, folded for the kernel ---
    if diffusion:
        start_angle = math.acos(diff_config["max_sr"])
        end_angle = math.acos(diff_config["min_sr"])
        angle = start_angle + t * (end_angle - start_angle)
        noise_rates = jnp.sin(angle)
        betas = 2.0 * (end_angle - start_angle) * jnp.tan(angle)
        c0 = -0.5 * betas
        c1 = 0.5 * betas / noise_rates
        scalars = jnp.stack([c0, c1]).astype(jnp.float32)
    else:
        scalars = jnp.zeros((2,), jnp.float32)

    # --- glue: fuse time conditioning into one bias, pack tiny params into 2 blocks ---
    bias_t = (t * params["wt"] + params["b1"]).reshape(H, 1).astype(jnp.float32)
    p1 = jnp.concatenate([params["w1"].T.astype(jnp.float32), bias_t], axis=1)        # (H, D+1)
    p2 = jnp.concatenate([params["w2"].T.astype(jnp.float32),
                          params["b2"].reshape(D, 1).astype(jnp.float32)], axis=1)    # (D, H+1)

    # --- flatten batch*particles; feature-major (lane-dense) layout ---
    rows = B * N
    tm, rows_p, n_steps = _derive_tile(rows, D, H, vmem_budget_bytes)

    x2 = x.reshape(rows, D).astype(jnp.float32)
    m2 = jnp.broadcast_to(mask, (B, N, 1)).reshape(rows, 1).astype(jnp.float32)
    pad = rows_p - rows
    if pad:
        x2 = jnp.pad(x2, ((0, pad), (0, 0)))
        m2 = jnp.pad(m2, ((0, pad), (0, 0)))
    xt = x2.T                                   # (D, rows_p)  rows on lanes
    mt = m2.T                                   # (1, rows_p)

    grid_spec = pltpu.PrefetchScalarGridSpec(
        num_scalar_prefetch=1,
        grid=(n_steps,),
        in_specs=[
            pl.BlockSpec((D, tm), lambda i, s: (0, i)),          # x (lane-dense rows)
            pl.BlockSpec((1, tm), lambda i, s: (0, i)),          # mask
            pl.BlockSpec((H, D + 1), lambda i, s: (0, 0)),       # packed W1^T | fused bias
            pl.BlockSpec((D, H + 1), lambda i, s: (0, 0)),       # packed W2^T | b2
        ],
        out_specs=pl.BlockSpec((D, tm), lambda i, s: (0, i)),
    )

    out = pl.pallas_call(
        partial(_vf_kernel, diffusion=diffusion, d_in=D, hidden=H),
        grid_spec=grid_spec,
        out_shape=jax.ShapeDtypeStruct((D, rows_p), jnp.float32),
        compiler_params=pltpu.CompilerParams(
            dimension_semantics=("parallel",),
            vmem_limit_bytes=48 * 1024 * 1024,   # fits v7x's 64 MiB VMEM/TC with headroom
        ),
    )(scalars, xt, mt, p1, p2)

    return out[:, :rows].T.reshape(B, N, D)


# ---------------------------------------------------------------------------
# Pure-JAX reference (faithful to the PyTorch wrapper math)
# ---------------------------------------------------------------------------
def _ref_forward(t, x, mask, params, *, loss_type, diff_config):
    h = x @ params["w1"] + t * params["wt"] + params["b1"]
    h = jnp.where(h > 0, h, 0.01 * h)
    v = (h @ params["w2"] + params["b2"]) * mask
    if loss_type == "diffusion":
        start_angle = math.acos(diff_config["max_sr"])
        end_angle = math.acos(diff_config["min_sr"])
        angle = start_angle + t * (end_angle - start_angle)
        noise_rates = jnp.sin(angle)
        betas = 2.0 * (end_angle - start_angle) * jnp.tan(angle)
        return -0.5 * betas * (x - v / noise_rates)
    return v


if __name__ == "__main__":
    key = jax.random.PRNGKey(0)
    B, N, D, H = 2, 8, 4, 32

    kx, km, k1, kt, k2 = jax.random.split(key, 5)
    x = jax.random.normal(kx, (B, N, D), jnp.float32)
    # particle mask: first few particles valid, rest padded
    mask = (jnp.arange(N)[None, :, None]
            < jnp.array([6, 8])[:, None, None]).astype(jnp.float32)

    params = {
        "w1": jax.random.normal(k1, (D, H), jnp.float32) * 0.2,
        "wt": jax.random.normal(kt, (1, H), jnp.float32) * 0.2,
        "b1": jnp.zeros((1, H), jnp.float32),
        "w2": jax.random.normal(k2, (H, D), jnp.float32) * 0.2,
        "b2": jnp.zeros((1, D), jnp.float32),
    }

    t = jnp.float32(0.3)
    diff_cfg = {"max_sr": 0.999, "min_sr": 0.02}

    ok = True
    for loss_type in ("FM-OT", "diffusion"):
        out = ode_wrapper_forward(t, x, mask, params, loss_type=loss_type,
                                  diff_config=diff_cfg)
        jax.block_until_ready(out)
        ref = _ref_forward(t, x, mask, params, loss_type=loss_type,
                           diff_config=diff_cfg)
        if not jnp.allclose(out, ref, atol=1e-5, rtol=1e-5):
            ok = False

    if ok:
        print("KERNEL_OK")
</pallas_src>

<mosaic_0001>
module attributes {stable_mosaic.version = 11 : i64} {
  func.func @_vf_kernel(%arg0: i32, %arg1: memref<2xf32, #tpu.memory_space<smem>>, %arg2: memref<4x128xf32, #tpu.memory_space<vmem>>, %arg3: memref<1x128xf32, #tpu.memory_space<vmem>>, %arg4: memref<32x5xf32, #tpu.memory_space<vmem>>, %arg5: memref<4x33xf32, #tpu.memory_space<vmem>>, %arg6: memref<4x128xf32, #tpu.memory_space<vmem>>) attributes {dimension_semantics = [#tpu.dimension_semantics<parallel>], iteration_bounds = array<i64: 1>, scalar_prefetch = 1 : i64, scratch_operands = 0 : i64, tpu.core_type = #tpu.core_type<tc>, window_params = [{transform_indices = @transform_0, window_bounds = array<i64: 4, 128>}, {transform_indices = @transform_1, window_bounds = array<i64: 1, 128>}, {pipeline_mode = #tpu.pipeline_mode<synchronous>, transform_indices = @transform_2, window_bounds = array<i64: 32, 5>}, {pipeline_mode = #tpu.pipeline_mode<synchronous>, transform_indices = @transform_3, window_bounds = array<i64: 4, 33>}, {transform_indices = @transform_4, window_bounds = array<i64: 4, 128>}]} {
    %c0 = arith.constant 0 : index
    %c0_0 = arith.constant 0 : index
    %0 = vector.load %arg2[%c0, %c0_0] : memref<4x128xf32, #tpu.memory_space<vmem>>, vector<4x128xf32>
    %c0_1 = arith.constant 0 : index
    %c0_2 = arith.constant 0 : index
    %1 = vector.load %arg4[%c0_1, %c0_2] : memref<32x5xf32, #tpu.memory_space<vmem>>, vector<32x4xf32>
    %c0_3 = arith.constant 0 : index
    %c4 = arith.constant 4 : index
    %2 = vector.load %arg4[%c0_3, %c4] : memref<32x5xf32, #tpu.memory_space<vmem>>, vector<32x1xf32>
    %c0_4 = arith.constant 0 : index
    %c0_5 = arith.constant 0 : index
    %3 = vector.load %arg5[%c0_4, %c0_5] : memref<4x33xf32, #tpu.memory_space<vmem>>, vector<4x32xf32>
    %c0_6 = arith.constant 0 : index
    %c32 = arith.constant 32 : index
    %4 = vector.load %arg5[%c0_6, %c32] : memref<4x33xf32, #tpu.memory_space<vmem>>, vector<4x1xf32>
    %5 = vector.extract_strided_slice %1 {offsets = [0, 0], sizes = [32, 1], strides = [1, 1]} : vector<32x4xf32> to vector<32x1xf32>
    %6 = vector.extract_strided_slice %0 {offsets = [0, 0], sizes = [1, 128], strides = [1, 1]} : vector<4x128xf32> to vector<1x128xf32>
    %7 = vector.broadcast %5 : vector<32x1xf32> to vector<32x128xf32>
    %8 = vector.broadcast %6 : vector<1x128xf32> to vector<32x128xf32>
    %9 = arith.mulf %7, %8 : vector<32x128xf32>
    %10 = vector.broadcast %2 : vector<32x1xf32> to vector<32x128xf32>
    %11 = arith.addf %10, %9 : vector<32x128xf32>
    %12 = vector.extract_strided_slice %1 {offsets = [0, 1], sizes = [32, 1], strides = [1, 1]} : vector<32x4xf32> to vector<32x1xf32>
    %13 = vector.extract_strided_slice %0 {offsets = [1, 0], sizes = [1, 128], strides = [1, 1]} : vector<4x128xf32> to vector<1x128xf32>
    %14 = vector.broadcast %12 : vector<32x1xf32> to vector<32x128xf32>
    %15 = vector.broadcast %13 : vector<1x128xf32> to vector<32x128xf32>
    %16 = arith.mulf %14, %15 : vector<32x128xf32>
    %17 = arith.addf %11, %16 : vector<32x128xf32>
    %18 = vector.extract_strided_slice %1 {offsets = [0, 2], sizes = [32, 1], strides = [1, 1]} : vector<32x4xf32> to vector<32x1xf32>
    %19 = vector.extract_strided_slice %0 {offsets = [2, 0], sizes = [1, 128], strides = [1, 1]} : vector<4x128xf32> to vector<1x128xf32>
    %20 = vector.broadcast %18 : vector<32x1xf32> to vector<32x128xf32>
    %21 = vector.broadcast %19 : vector<1x128xf32> to vector<32x128xf32>
    %22 = arith.mulf %20, %21 : vector<32x128xf32>
    %23 = arith.addf %17, %22 : vector<32x128xf32>
    %24 = vector.extract_strided_slice %1 {offsets = [0, 3], sizes = [32, 1], strides = [1, 1]} : vector<32x4xf32> to vector<32x1xf32>
    %25 = vector.extract_strided_slice %0 {offsets = [3, 0], sizes = [1, 128], strides = [1, 1]} : vector<4x128xf32> to vector<1x128xf32>
    %26 = vector.broadcast %24 : vector<32x1xf32> to vector<32x128xf32>
    %27 = vector.broadcast %25 : vector<1x128xf32> to vector<32x128xf32>
    %28 = arith.mulf %26, %27 : vector<32x128xf32>
    %29 = arith.addf %23, %28 : vector<32x128xf32>
    %cst = arith.constant 0.000000e+00 : f32
    %30 = vector.broadcast %cst : f32 to vector<32x128xf32>
    %31 = arith.cmpf ogt, %29, %30 : vector<32x128xf32>
    %cst_7 = arith.constant 0.00999999977 : f32
    %32 = vector.broadcast %cst_7 : f32 to vector<32x128xf32>
    %33 = arith.mulf %32, %29 : vector<32x128xf32>
    %34 = arith.select %31, %29, %33 : vector<32x128xi1>, vector<32x128xf32>
    %cst_8 = arith.constant dense<0.000000e+00> : vector<4x128xf32>
    %35 = tpu.matmul %3, %34, %cst_8 {dimension_numbers = #tpu.dot_dimension_numbers<[1], [0], [0], [1], [0, 0, 1, 1], [], []>} : vector<4x32xf32>, vector<32x128xf32>, vector<4x128xf32> -> vector<4x128xf32>
    %36 = vector.broadcast %4 : vector<4x1xf32> to vector<4x128xf32>
    %37 = arith.addf %35, %36 : vector<4x128xf32>
    %c0_9 = arith.constant 0 : index
    %c0_10 = arith.constant 0 : index
    %38 = vector.load %arg3[%c0_9, %c0_10] : memref<1x128xf32, #tpu.memory_space<vmem>>, vector<1x128xf32>
    %39 = vector.broadcast %38 : vector<1x128xf32> to vector<4x128xf32>
    %40 = arith.mulf %37, %39 : vector<4x128xf32>
    %c0_11 = arith.constant 0 : index
    %c0_12 = arith.constant 0 : index
    %41 = vector.load %arg6[%c0_11, %c0_12] : memref<4x128xf32, #tpu.memory_space<vmem>>, vector<4x128xf32>
    tpu.vector_store %arg6[%c0_11, %c0_12], %40 {strides = array<i32>} : memref<4x128xf32, #tpu.memory_space<vmem>>, vector<4x128xf32>,
    return
  }
  func.func @transform_0(%arg0: i32, %arg1: memref<2xf32, #tpu.memory_space<smem>>) -> (i32, i32) {
    %c0_i32 = arith.constant 0 : i32
    %c0_i32_0 = arith.constant 0 : i32
    return %c0_i32, %arg0 : i32, i32
  }
  func.func @transform_1(%arg0: i32, %arg1: memref<2xf32, #tpu.memory_space<smem>>) -> (i32, i32) {
    %c0_i32 = arith.constant 0 : i32
    %c0_i32_0 = arith.constant 0 : i32
    return %c0_i32, %arg0 : i32, i32
  }
  func.func @transform_2(%arg0: i32, %arg1: memref<2xf32, #tpu.memory_space<smem>>) -> (i32, i32) {
    %c0_i32 = arith.constant 0 : i32
    %c0_i32_0 = arith.constant 0 : i32
    %c0_i32_1 = arith.constant 0 : i32
    return %c0_i32, %c0_i32_0 : i32, i32
  }
  func.func @transform_3(%arg0: i32, %arg1: memref<2xf32, #tpu.memory_space<smem>>) -> (i32, i32) {
    %c0_i32 = arith.constant 0 : i32
    %c0_i32_0 = arith.constant 0 : i32
    %c0_i32_1 = arith.constant 0 : i32
    return %c0_i32, %c0_i32_0 : i32, i32
  }
  func.func @transform_4(%arg0: i32, %arg1: memref<2xf32, #tpu.memory_space<smem>>) -> (i32, i32) {
    %c0_i32 = arith.constant 0 : i32
    %c0_i32_0 = arith.constant 0 : i32
    return %c0_i32, %arg0 : i32, i32
  }
}

</mosaic_0001>

<llo_original>
// kernel: tpu_custom_call.1
$region0: #{tpu_custom_call.1}
  #allocation0 [shape = 'u32[]', space=smem, size = 0x4, offset = 0x4, fixed_abs, tag = 'smem constant byte address 0x4 - core index']
  #allocation1 [shape = 'u32[144,128]{1,0:T(1,128)}', space=vmem, size = 0x12000, scoped, tag = 'internal scratch']
  #allocation2 [shape = 's32[1]{0}', space=sflag, size = 0x4, scoped, tag = 'scoped memory for tpu_custom_call.1']
  #allocation3 [shape = 'u8[512]{0}', space=smem, size = 0x200, scoped, tag = 'prefetched SMEM operand 0']
  %s0 = inlined_call_operand.vmem [shape: f32[2], index: 0, kind: input, shape index: {}]
  %s1 = inlined_call_operand.vmem [shape: f32[4,128], index: 1, kind: input, shape index: {}]
  %s2 = inlined_call_operand.vmem [shape: f32[1,128], index: 2, kind: input, shape index: {}]
  %s3 = inlined_call_operand.vmem [shape: f32[32,5], index: 3, kind: input, shape index: {}]
  %s4 = inlined_call_operand.vmem [shape: f32[4,33], index: 4, kind: input, shape index: {}]
  %s5 = inlined_call_operand.hbm [shape: f32[4,128], index: 5, kind: output, shape index: {}]
  %s6 = sld [smem:[#allocation0]]
  $region26: #{tpu_custom_call.1} parent=0
    _
  %s8 = ssub.s32 1, %s6
  %s9 = scalar_select 0, %s8, %s6
  %s10 = sshll.u32 %s0, 4
  %s11 = int_to_ptr.vmem [resolvable:$true] %s10
  %13 = dma.vmem_to_smem %s11, 16, [#allocation3], [#allocation2]
  %14 = dma.done [#allocation2], 16
  %15 = sfence
  $region1: #{tpu_custom_call.1} parent=0
    #allocation4 [shape = 'u8[2048]{0}', space=vmem, size = 0x800, scoped, tag = 'output window, operand 0, single buffered']
    #allocation5 [shape = 's32[1]{0}', space=sflag, size = 0x4, scoped, tag = 'scoped memory for tpu_custom_call.1']
    %16 = vsyncpa [#allocation5], 0
    // Predicated region
    $region2: #{tpu_custom_call.1} parent=1 // pred_check
      _
    $region3: #{tpu_custom_call.1} parent=1 // pred_check_branch
      %18 = sbr.rel (0) target = $region5
    $region4: #{tpu_custom_call.1} parent=1 // pred_region
      _
    $region5: #{tpu_custom_call.1} parent=1 // pred_fallthru
      _
    // Predicated region
    $region6: #{tpu_custom_call.1} parent=1 // pred_check
      _
    $region7: #{tpu_custom_call.1} parent=1 // pred_check_branch
      %20 = sbr.rel (0) target = $region9
    $region8: #{tpu_custom_call.1} parent=1 // pred_region
      _
    $region9: #{tpu_custom_call.1} parent=1 // pred_fallthru
      _
    // Predicated region
    $region10: #{tpu_custom_call.1} parent=1 // pred_check
      _
    $region11: #{tpu_custom_call.1} parent=1 // pred_check_branch
      %22 = sbr.rel (0) target = $region13
    $region12: #{tpu_custom_call.1} parent=1 // pred_region
      _
    $region13: #{tpu_custom_call.1} parent=1 // pred_fallthru
      _
    // Predicated region
    $region14: #{tpu_custom_call.1} parent=1 // pred_check
      _
    $region15: #{tpu_custom_call.1} parent=1 // pred_check_branch
      %24 = sbr.rel (0) target = $region17
    $region16: #{tpu_custom_call.1} parent=1 // pred_region
      _
    $region17: #{tpu_custom_call.1} parent=1 // pred_fallthru
      _
    %v25 = vld [vmem:[%s1] sm:$0xf]
    %v26 = vld [vmem:[%s3] sm:$0xff]
    %v27 = vld [vmem:[%s3 + $0x8] sm:$0xff]
    %v28 = vld [vmem:[%s3 + $0x10] sm:$0xff]
    %v29 = vld [vmem:[%s3 + $0x18] sm:$0xff]
    %v30 = vld [vmem:[%s4] sm:$0xf]
    %32 = vset.pattern.permute.xlu0 0
    %33 = vperm.xlu0 %32, %v26
    %v34 = vpop.permute.xlu0 %33
    %37 = vset.pattern.permute.xlu0 0
    %38 = vperm.xlu0 %37, %v27
    %v39 = vpop.permute.xlu0 %38
    %42 = vset.pattern.permute.xlu0 0
    %43 = vperm.xlu0 %42, %v28
    %v44 = vpop.permute.xlu0 %43
    %47 = vset.pattern.permute.xlu0 0
    %48 = vperm.xlu0 %47, %v29
    %v49 = vpop.permute.xlu0 %48
    %v51 = vlaneseq
    %v52 = vshrl.u32 %v51, 7
    %v53 = vsub.s32 0, %v52
    %v54 = vrot.slane %v25, %v53
    %v55 = vmul.f32 %v34, %v54
    %v56 = vmul.f32 %v39, %v54
    %v57 = vmul.f32 %v44, %v54
    %v58 = vmul.f32 %v49, %v54
    %59 = vset.pattern.permute.xlu0 4
    %60 = vperm.xlu0 %59, %v26
    %v61 = vpop.permute.xlu0 %60
    %63 = vset.pattern.permute.xlu0 4
    %64 = vperm.xlu0 %63, %v27
    %v65 = vpop.permute.xlu0 %64
    %67 = vset.pattern.permute.xlu0 4
    %68 = vperm.xlu0 %67, %v28
    %v69 = vpop.permute.xlu0 %68
    %71 = vset.pattern.permute.xlu0 4
    %72 = vperm.xlu0 %71, %v29
    %v73 = vpop.permute.xlu0 %72
    %v75 = vadd.f32 %v61, %v55
    %v76 = vadd.f32 %v65, %v56
    %v77 = vadd.f32 %v69, %v57
    %v78 = vadd.f32 %v73, %v58
    %79 = vset.pattern.permute.xlu0 1
    %80 = vperm.xlu0 %79, %v26
    %v81 = vpop.permute.xlu0 %80
    %83 = vset.pattern.permute.xlu0 1
    %84 = vperm.xlu0 %83, %v27
    %v85 = vpop.permute.xlu0 %84
    %87 = vset.pattern.permute.xlu0 1
    %88 = vperm.xlu0 %87, %v28
    %v89 = vpop.permute.xlu0 %88
    %91 = vset.pattern.permute.xlu0 1
    %92 = vperm.xlu0 %91, %v29
    %v93 = vpop.permute.xlu0 %92
    %v95 = vlaneseq
    %v96 = vshrl.u32 %v95, 7
    %v97 = vsub.s32 1, %v96
    %v98 = vrot.slane %v25, %v97
    %v99 = vmul.f32 %v81, %v98
    %v100 = vmul.f32 %v85, %v98
    %v101 = vmul.f32 %v89, %v98
    %v102 = vmul.f32 %v93, %v98
    %v103 = vadd.f32 %v75, %v99
    %v104 = vadd.f32 %v76, %v100
    %v105 = vadd.f32 %v77, %v101
    %v106 = vadd.f32 %v78, %v102
    %107 = vset.pattern.permute.xlu0 2
    %108 = vperm.xlu0 %107, %v26
    %v109 = vpop.permute.xlu0 %108
    %111 = vset.pattern.permute.xlu0 2
    %112 = vperm.xlu0 %111, %v27
    %v113 = vpop.permute.xlu0 %112
    %115 = vset.pattern.permute.xlu0 2
    %116 = vperm.xlu0 %115, %v28
    %v117 = vpop.permute.xlu0 %116
    %119 = vset.pattern.permute.xlu0 2
    %120 = vperm.xlu0 %119, %v29
    %v121 = vpop.permute.xlu0 %120
    %v123 = vlaneseq
    %v124 = vshrl.u32 %v123, 7
    %v125 = vsub.s32 2, %v124
    %v126 = vrot.slane %v25, %v125
    %v127 = vmul.f32 %v109, %v126
    %v128 = vmul.f32 %v113, %v126
    %v129 = vmul.f32 %v117, %v126
    %v130 = vmul.f32 %v121, %v126
    %v131 = vadd.f32 %v103, %v127
    %v132 = vadd.f32 %v104, %v128
    %v133 = vadd.f32 %v105, %v129
    %v134 = vadd.f32 %v106, %v130
    %135 = vset.pattern.permute.xlu0 3
    %136 = vperm.xlu0 %135, %v26
    %v137 = vpop.permute.xlu0 %136
    %139 = vset.pattern.permute.xlu0 3
    %140 = vperm.xlu0 %139, %v27
    %v141 = vpop.permute.xlu0 %140
    %143 = vset.pattern.permute.xlu0 3
    %144 = vperm.xlu0 %143, %v28
    %v145 = vpop.permute.xlu0 %144
    %147 = vset.pattern.permute.xlu0 3
    %148 = vperm.xlu0 %147, %v29
    %v149 = vpop.permute.xlu0 %148
    %v151 = vlaneseq
    %v152 = vshrl.u32 %v151, 7
    %v153 = vsub.s32 3, %v152
    %v154 = vrot.slane %v25, %v153
    %v155 = vmul.f32 %v137, %v154
    %v156 = vmul.f32 %v141, %v154
    %v157 = vmul.f32 %v145, %v154
    %v158 = vmul.f32 %v149, %v154
    %v159 = vadd.f32 %v131, %v155
    %v160 = vadd.f32 %v132, %v156
    %v161 = vadd.f32 %v133, %v157
    %v162 = vadd.f32 %v134, %v158
    %vm163 = vcmp.gt.f32.partialorder %v159, 0.0
    %vm164 = vcmp.gt.f32.partialorder %v160, 0.0
    %vm165 = vcmp.gt.f32.partialorder %v161, 0.0
    %vm166 = vcmp.gt.f32.partialorder %v162, 0.0
    %v167 = vmul.f32 %v159, 0.01
    %v168 = vmul.f32 %v160, 0.01
    %v169 = vmul.f32 %v161, 0.01
    %v170 = vmul.f32 %v162, 0.01
    %v171 = vsel %vm163, %v159, %v167
    %v172 = vsel %vm164, %v160, %v168
    %v173 = vsel %vm165, %v161, %v169
    %v174 = vsel %vm166, %v162, %v170
    %176 = vset.pattern.permute.xlu0 32
    %177 = vperm.xlu0 %176, %v30
    %v178 = vpop.permute.xlu0 %177
    %vm180 = vcmask 261120
    %v181 = vsel %vm180, %v30, 0
    %183 = vmatprep.subr.mxu0 0.0
    %184 = vmatpush1.msra.mxu0 0.0
    %185 = vmatprep.subr.mxu0 0.0
    %186 = vmatpush1.msra.mxu0 0.0
    %187 = vmatprep.subr.mxu0 0.0
    %188 = vmatpush1.msra.mxu0 0.0
    %189 = vmatprep.subr.mxu0 0.0
    %190 = vmatpush1.msra.mxu0 0.0
    %191 = vmatprep.subr.mxu0 0.0
    %192 = vmatpush1.msra.mxu0 0.0
    %193 = vmatprep.subr.mxu0 0.0
    %194 = vmatpush1.msra.mxu0 0.0
    %195 = vmatprep.subr.mxu0 0.0
    %196 = vmatpush1.msra.mxu0 0.0
    %197 = vmatprep.subr.mxu0 0.0
    %198 = vmatpush1.msra.mxu0 0.0
    %199 = vmatprep.subr.mxu0 0.0
    %200 = vmatpush1.msra.mxu0 0.0
    %201 = vmatprep.subr.mxu0 0.0
    %202 = vmatpush1.msra.mxu0 0.0
    %203 = vmatprep.subr.mxu0 0.0
    %204 = vmatpush1.msra.mxu0 0.0
    %205 = vmatprep.subr.mxu0 0.0
    %206 = vmatpush1.msra.mxu0 0.0
    %207 = vmatprep.subr.mxu0 0.0
    %208 = vmatpush1.msra.mxu0 %v174
    %209 = vmatprep.subr.mxu0 0.0
    %210 = vmatpush1.msra.mxu0 %v173
    %211 = vmatprep.subr.mxu0 0.0
    %212 = vmatpush1.msra.mxu0 %v172
    %213 = vmatprep.subr.mxu0 0.0
    %214 = vmatpush1.msra.mxu0 %v171
    %215 = vmatprep.subr.mxu0 0.0
    %216 = vmatpush2.msra.mxu0 0.0
    %217 = vmatprep.subr.mxu0 0.0
    %218 = vmatpush2.msra.mxu0 0.0
    %219 = vmatprep.subr.mxu0 0.0
    %220 = vmatpush2.msra.mxu0 0.0
    %221 = vmatprep.subr.mxu0 0.0
    %222 = vmatpush2.msra.mxu0 0.0
    %223 = vmatprep.subr.mxu0 0.0
    %224 = vmatpush2.msra.mxu0 0.0
    %225 = vmatprep.subr.mxu0 0.0
    %226 = vmatpush2.msra.mxu0 0.0
    %227 = vmatprep.subr.mxu0 0.0
    %228 = vmatpush2.msra.mxu0 0.0
    %229 = vmatprep.subr.mxu0 0.0
    %230 = vmatpush2.msra.mxu0 0.0
    %231 = vmatprep.subr.mxu0 0.0
    %232 = vmatpush2.msra.mxu0 0.0
    %233 = vmatprep.subr.mxu0 0.0
    %234 = vmatpush2.msra.mxu0 0.0
    %235 = vmatprep.subr.mxu0 0.0
    %236 = vmatpush2.msra.mxu0 0.0
    %237 = vmatprep.subr.mxu0 0.0
    %238 = vmatpush2.msra.mxu0 0.0
    %239 = vmatprep.subr.mxu0 0.0
    %240 = vmatpush2.msra.mxu0 0.0
    %241 = vmatprep.subr.mxu0 0.0
    %242 = vmatpush2.msra.mxu0 0.0
    %243 = vmatprep.subr.mxu0 0.0
    %244 = vmatpush2.msra.mxu0 0.0
    %245 = vmatprep.subr.mxu0 0.0
    %246 = vmatpush2.msra.mxu0 0.0
    %247 = vmatprep.mubr.f32.mxu0 0.0
    %248 = vmatmul.mubr.f32.gmra.mxu0 %v181
    %v249 = vpop.f32.mrf.mxu0
    %v250 = vadd.f32 %v178, %v249
    %v251 = vpop.f32.mrf.mxu0
    %252 = vdwg.mxu0
    %v253 = vld [vmem:[%s2] sm:$0x1]
    %v255 = vlaneseq
    %v256 = vshrl.u32 %v255, 7
    %v257 = vsub.s32 0, %v256
    %v258 = vrot.slane %v253, %v257
    %v260 = vmul.f32 %v250, %v258
    %261 = vst [vmem:[#allocation4] sm:$0xf] %v260
    // Predicated region
    $region18: #{tpu_custom_call.1} parent=1 // pred_check
      _
    $region19: #{tpu_custom_call.1} parent=1 // pred_check_branch
      %263 = sbr.rel (0) target = $region21
    $region20: #{tpu_custom_call.1} parent=1 // pred_region
      %s265 = ssub.s32 64, 64
      %266 = vsyncadd [#allocation5], %s265
      %s268 = sshll.u32 [#allocation4], 4
      %s269 = int_to_ptr.vmem [resolvable:$true] %s268
      %271 = dma.vmem_to_hbm [thread:$0]  %s269, 64, %s5, [#allocation5]
    $region21: #{tpu_custom_call.1} parent=1 // pred_fallthru
      _
    // Predicated region
    $region22: #{tpu_custom_call.1} parent=1 // pred_check
      _
    $region23: #{tpu_custom_call.1} parent=1 // pred_check_branch
      %273 = sbr.rel (0) target = $region25
    $region24: #{tpu_custom_call.1} parent=1 // pred_region
      %274 = dma.done [#allocation5], 64
    $region25: #{tpu_custom_call.1} parent=1 // pred_fallthru
      _
    %275 = vsyncpa [#allocation5], 1

</llo_original>
